<compile_context>
chip_gen: v7x
topology: tpu7x:2x2x1
jax: 0.10.0
libtpu: 0.0.40
codegen_flags: <defaults>
</compile_context>

<pallas_src>
import jax
import jax.numpy as jnp
from jax.experimental import pallas as pl
from jax.experimental.pallas import tpu as pltpu

UNITS = [25, 1, 25]          # module defaults
U0 = UNITS[0]                # hidden units of layer1/layer2
LANES = 128                  # batch elements per vreg row (lane axis)
CHUNK_ROWS = 32              # inner-loop sublane chunk (4 vregs per operand)
ROWS_MAX = 1024              # max rows per grid step (512 KiB f32 block/operand)
SPLIT_ROWS = 256             # below this, use a single grid step

# Flat SMEM parameter layout (all 32-bit scalars).
OFF_W1 = 0                   # layer1 weight column            (25,)
OFF_B1 = OFF_W1 + U0         # layer1 bias                     (25,)
OFF_W2 = OFF_B1 + U0         # layer2 weight row               (25,)
OFF_A = OFF_W2 + U0          # folded layer3/4: coeff of x2    (1,)
OFF_B = OFF_A + 1            # folded layer3/4: coeff of y2    (1,)
OFF_C = OFF_B + 1            # folded layer3/4 + b2 constant   (1,)
N_PARAMS = OFF_C + 1         # 78


def _make_kernel(rows, chunk, use_sigmoid=True):
    """Build a kernel for (rows, 128) f32 blocks processed in `chunk`-row pieces."""
    assert rows % chunk == 0
    n_chunks = rows // chunk

    def kernel(p_ref, x_ref, y_ref, o_ref):
        # Hoist every SMEM scalar read to kernel entry (loop-invariant).
        w1 = [p_ref[OFF_W1 + u] for u in range(U0)]
        b1 = [p_ref[OFF_B1 + u] for u in range(U0)]
        w2 = [p_ref[OFF_W2 + u] for u in range(U0)]
        k_a = p_ref[OFF_A]
        k_b = p_ref[OFF_B]
        k_c = p_ref[OFF_C]

        def branch(v):
            # layer1 (1->25) + tanh + layer2 (25->1), unrolled over hidden
            # units.  The 25->1 contraction is a scalar-weighted FMA chain:
            # all ops are full-lane-width elementwise (VALU) + tanh (EUP),
            # no cross-lane XLU reduction, no MXU.
            acc = w2[0] * jnp.tanh(v * w1[0] + b1[0])
            for u in range(1, U0):
                acc = acc + w2[u] * jnp.tanh(v * w1[u] + b1[u])
            return acc

        def do_chunk(r):
            x2 = branch(x_ref[pl.ds(r, chunk), :])
            # Defer the y load until the x branch is finished -> small live set.
            y2 = branch(y_ref[pl.ds(r, chunk), :])
            z = k_a * x2 + k_b * y2 + k_c        # folded layer3∘layer4 (+ b2)
            if use_sigmoid:
                z = jax.nn.sigmoid(z)
            o_ref[pl.ds(r, chunk), :] = z

        if n_chunks == 1:
            do_chunk(0)
        else:
            def body(c, carry):
                do_chunk(pl.multiple_of(c * chunk, chunk))
                return carry
            jax.lax.fori_loop(0, n_chunks, body, 0, unroll=2)

    return kernel


def _round_up(a, m):
    return ((a + m - 1) // m) * m


def _plan(n_elems):
    """Pick (rows_per_step, grid_steps, chunk_rows).

    Small N  -> one step, one small chunk (no forced padding on single-TC chips).
    Medium N -> one step, multiple 32-row chunks.
    Large N  -> even number of balanced 'parallel' steps (v7x megacore), blocks
                capped at ROWS_MAX rows (512 KiB/operand; trivially fits VMEM).
    """
    n_rows = max(1, -(-n_elems // LANES))
    if n_rows <= CHUNK_ROWS:
        rows = _round_up(n_rows, 8)
        return rows, 1, rows
    if n_rows <= SPLIT_ROWS:
        return _round_up(n_rows, CHUNK_ROWS), 1, CHUNK_ROWS
    steps = _round_up(max(2, -(-n_rows // ROWS_MAX)), 2)
    rows = min(ROWS_MAX, _round_up(-(-n_rows // steps), CHUNK_ROWS))
    steps = _round_up(-(-n_rows // rows), 2)
    return rows, steps, CHUNK_ROWS


def pack_params(p):
    """Flatten nn.Linear-shaped params + fold layer3∘layer4 into (A, B, C)."""
    W1 = p["W1"].reshape(U0).astype(jnp.float32)       # (25,1) -> (25,)
    b1 = p["b1"].reshape(U0).astype(jnp.float32)
    W2 = p["W2"].reshape(U0).astype(jnp.float32)       # (1,25) -> (25,)
    b2 = p["b2"].reshape(()).astype(jnp.float32)
    W3 = p["W3"].astype(jnp.float32)                   # (25, 2)
    b3 = p["b3"].reshape(-1).astype(jnp.float32)       # (25,)
    W4 = p["W4"].reshape(-1).astype(jnp.float32)       # (1,25) -> (25,)
    b4 = p["b4"].reshape(()).astype(jnp.float32)

    A = jnp.dot(W4, W3[:, 0])                          # coeff of x2
    B = jnp.dot(W4, W3[:, 1])                          # coeff of y2
    C = jnp.dot(W4, b3) + b4 + (A + B) * b2            # constant (b2 folded in)

    flat = jnp.concatenate([W1, b1, W2, jnp.stack([A, B, C])])
    assert flat.shape == (N_PARAMS,)
    return flat


def mlp_forward_pallas(x, y, params, sigmoid=True):
    xf = jnp.asarray(x, jnp.float32).reshape(-1)        # (N,)
    yf = jnp.asarray(y, jnp.float32).reshape(-1)
    N = xf.shape[0]
    assert yf.shape[0] == N

    rows, steps, chunk = _plan(N)
    padded_rows = rows * steps
    M = padded_rows * LANES
    if M != N:
        xf = jnp.pad(xf, (0, M - N))
        yf = jnp.pad(yf, (0, M - N))
    x2d = xf.reshape(padded_rows, LANES)                 # batch on lanes+sublanes
    y2d = yf.reshape(padded_rows, LANES)

    p_flat = pack_params(params)

    out2d = pl.pallas_call(
        _make_kernel(rows, chunk, use_sigmoid=sigmoid),
        out_shape=jax.ShapeDtypeStruct((padded_rows, LANES), jnp.float32),
        grid=(steps,),
        in_specs=[
            pl.BlockSpec(memory_space=pltpu.MemorySpace.SMEM),    # 78 scalars
            pl.BlockSpec((rows, LANES), lambda i: (i, 0)),        # x
            pl.BlockSpec((rows, LANES), lambda i: (i, 0)),        # y
        ],
        out_specs=pl.BlockSpec((rows, LANES), lambda i: (i, 0)),  # lane-dense
        compiler_params=pltpu.CompilerParams(
            dimension_semantics=("parallel",)),
    )(p_flat, x2d, y2d)

    return out2d.reshape(-1)[:N]                          # squeeze to (N,)


def make_params(key, units=UNITS):
    """Deterministic parameters matching nn.Linear shapes (weight: (out,in))."""
    ks = jax.random.split(key, 8)

    def uinit(k, shape, fan_in):
        bound = 1.0 / jnp.sqrt(jnp.float32(fan_in))
        return jax.random.uniform(k, shape, jnp.float32, -bound, bound)

    W1 = uinit(ks[0], (units[0], 1), 1)
    b1 = uinit(ks[1], (units[0],), 1)
    W2 = uinit(ks[2], (units[1], units[0]), units[0])
    b2 = uinit(ks[3], (units[1],), units[0])
    W3 = uinit(ks[4], (units[2], units[1] * 2), units[1] * 2)
    b3 = uinit(ks[5], (units[2],), units[1] * 2)
    W4 = uinit(ks[6], (1, units[2]), units[2])
    b4 = uinit(ks[7], (1,), units[2])
    return dict(W1=W1, b1=b1, W2=W2, b2=b2, W3=W3, b3=b3, W4=W4, b4=b4)


def mlp_forward_ref(x, y, p, sigmoid=True):
    """Pure-JAX reference mirroring the PyTorch forward (un-folded layers)."""
    def branch(v):
        h = jnp.tanh(v @ p["W1"].T + p["b1"])
        return h @ p["W2"].T + p["b2"]
    x2 = branch(x)                        # (N, 1)
    y2 = branch(y)                        # (N, 1)
    z = jnp.stack((x2, y2), axis=-1)      # (N, 1, 2)
    z = (z @ p["W3"].T + p["b3"]) @ p["W4"].T + p["b4"]
    if sigmoid:
        z = jax.nn.sigmoid(z)
    return z[:, 0, 0]


if __name__ == "__main__":
    key = jax.random.PRNGKey(0)
    kp = jax.random.fold_in(key, 7)
    params = make_params(kp)

    # Primary small-shape test (module-consistent (N, 1) inputs) plus two
    # shapes that exercise the chunked-loop and multi-step grid paths.
    for n in (256, 5000, 40000):
        kx, ky = jax.random.split(jax.random.fold_in(key, n), 2)
        x = jax.random.normal(kx, (n, 1), jnp.float32)
        y = jax.random.normal(ky, (n, 1), jnp.float32)

        out = jax.block_until_ready(mlp_forward_pallas(x, y, params))
        ref = mlp_forward_ref(x, y, params)

        assert out.shape == (n,)
        err = float(jnp.max(jnp.abs(out - ref)))
        assert jnp.allclose(out, ref, atol=2e-5, rtol=2e-5), \
            f"N={n} max err {err}"

    print("KERNEL_OK")
</pallas_src>

<mosaic_0001>
module attributes {stable_mosaic.version = 11 : i64} {
  func.func @kernel(%arg0: i32, %arg1: memref<78xf32, #tpu.memory_space<smem>>, %arg2: memref<8x128xf32, #tpu.memory_space<vmem>>, %arg3: memref<8x128xf32, #tpu.memory_space<vmem>>, %arg4: memref<8x128xf32, #tpu.memory_space<vmem>>) attributes {dimension_semantics = [#tpu.dimension_semantics<parallel>], iteration_bounds = array<i64: 1>, scalar_prefetch = 0 : i64, scratch_operands = 0 : i64, tpu.core_type = #tpu.core_type<tc>, window_params = [{transform_indices = @transform_0, window_bounds = array<i64: 78>}, {transform_indices = @transform_1, window_bounds = array<i64: 8, 128>}, {transform_indices = @transform_2, window_bounds = array<i64: 8, 128>}, {transform_indices = @transform_3, window_bounds = array<i64: 8, 128>}]} {
    %c0 = arith.constant 0 : index
    %0 = memref.load %arg1[%c0] : memref<78xf32, #tpu.memory_space<smem>>
    %c1 = arith.constant 1 : index
    %1 = memref.load %arg1[%c1] : memref<78xf32, #tpu.memory_space<smem>>
    %c2 = arith.constant 2 : index
    %2 = memref.load %arg1[%c2] : memref<78xf32, #tpu.memory_space<smem>>
    %c3 = arith.constant 3 : index
    %3 = memref.load %arg1[%c3] : memref<78xf32, #tpu.memory_space<smem>>
    %c4 = arith.constant 4 : index
    %4 = memref.load %arg1[%c4] : memref<78xf32, #tpu.memory_space<smem>>
    %c5 = arith.constant 5 : index
    %5 = memref.load %arg1[%c5] : memref<78xf32, #tpu.memory_space<smem>>
    %c6 = arith.constant 6 : index
    %6 = memref.load %arg1[%c6] : memref<78xf32, #tpu.memory_space<smem>>
    %c7 = arith.constant 7 : index
    %7 = memref.load %arg1[%c7] : memref<78xf32, #tpu.memory_space<smem>>
    %c8 = arith.constant 8 : index
    %8 = memref.load %arg1[%c8] : memref<78xf32, #tpu.memory_space<smem>>
    %c9 = arith.constant 9 : index
    %9 = memref.load %arg1[%c9] : memref<78xf32, #tpu.memory_space<smem>>
    %c10 = arith.constant 10 : index
    %10 = memref.load %arg1[%c10] : memref<78xf32, #tpu.memory_space<smem>>
    %c11 = arith.constant 11 : index
    %11 = memref.load %arg1[%c11] : memref<78xf32, #tpu.memory_space<smem>>
    %c12 = arith.constant 12 : index
    %12 = memref.load %arg1[%c12] : memref<78xf32, #tpu.memory_space<smem>>
    %c13 = arith.constant 13 : index
    %13 = memref.load %arg1[%c13] : memref<78xf32, #tpu.memory_space<smem>>
    %c14 = arith.constant 14 : index
    %14 = memref.load %arg1[%c14] : memref<78xf32, #tpu.memory_space<smem>>
    %c15 = arith.constant 15 : index
    %15 = memref.load %arg1[%c15] : memref<78xf32, #tpu.memory_space<smem>>
    %c16 = arith.constant 16 : index
    %16 = memref.load %arg1[%c16] : memref<78xf32, #tpu.memory_space<smem>>
    %c17 = arith.constant 17 : index
    %17 = memref.load %arg1[%c17] : memref<78xf32, #tpu.memory_space<smem>>
    %c18 = arith.constant 18 : index
    %18 = memref.load %arg1[%c18] : memref<78xf32, #tpu.memory_space<smem>>
    %c19 = arith.constant 19 : index
    %19 = memref.load %arg1[%c19] : memref<78xf32, #tpu.memory_space<smem>>
    %c20 = arith.constant 20 : index
    %20 = memref.load %arg1[%c20] : memref<78xf32, #tpu.memory_space<smem>>
    %c21 = arith.constant 21 : index
    %21 = memref.load %arg1[%c21] : memref<78xf32, #tpu.memory_space<smem>>
    %c22 = arith.constant 22 : index
    %22 = memref.load %arg1[%c22] : memref<78xf32, #tpu.memory_space<smem>>
    %c23 = arith.constant 23 : index
    %23 = memref.load %arg1[%c23] : memref<78xf32, #tpu.memory_space<smem>>
    %c24 = arith.constant 24 : index
    %24 = memref.load %arg1[%c24] : memref<78xf32, #tpu.memory_space<smem>>
    %c25 = arith.constant 25 : index
    %25 = memref.load %arg1[%c25] : memref<78xf32, #tpu.memory_space<smem>>
    %c26 = arith.constant 26 : index
    %26 = memref.load %arg1[%c26] : memref<78xf32, #tpu.memory_space<smem>>
    %c27 = arith.constant 27 : index
    %27 = memref.load %arg1[%c27] : memref<78xf32, #tpu.memory_space<smem>>
    %c28 = arith.constant 28 : index
    %28 = memref.load %arg1[%c28] : memref<78xf32, #tpu.memory_space<smem>>
    %c29 = arith.constant 29 : index
    %29 = memref.load %arg1[%c29] : memref<78xf32, #tpu.memory_space<smem>>
    %c30 = arith.constant 30 : index
    %30 = memref.load %arg1[%c30] : memref<78xf32, #tpu.memory_space<smem>>
    %c31 = arith.constant 31 : index
    %31 = memref.load %arg1[%c31] : memref<78xf32, #tpu.memory_space<smem>>
    %c32 = arith.constant 32 : index
    %32 = memref.load %arg1[%c32] : memref<78xf32, #tpu.memory_space<smem>>
    %c33 = arith.constant 33 : index
    %33 = memref.load %arg1[%c33] : memref<78xf32, #tpu.memory_space<smem>>
    %c34 = arith.constant 34 : index
    %34 = memref.load %arg1[%c34] : memref<78xf32, #tpu.memory_space<smem>>
    %c35 = arith.constant 35 : index
    %35 = memref.load %arg1[%c35] : memref<78xf32, #tpu.memory_space<smem>>
    %c36 = arith.constant 36 : index
    %36 = memref.load %arg1[%c36] : memref<78xf32, #tpu.memory_space<smem>>
    %c37 = arith.constant 37 : index
    %37 = memref.load %arg1[%c37] : memref<78xf32, #tpu.memory_space<smem>>
    %c38 = arith.constant 38 : index
    %38 = memref.load %arg1[%c38] : memref<78xf32, #tpu.memory_space<smem>>
    %c39 = arith.constant 39 : index
    %39 = memref.load %arg1[%c39] : memref<78xf32, #tpu.memory_space<smem>>
    %c40 = arith.constant 40 : index
    %40 = memref.load %arg1[%c40] : memref<78xf32, #tpu.memory_space<smem>>
    %c41 = arith.constant 41 : index
    %41 = memref.load %arg1[%c41] : memref<78xf32, #tpu.memory_space<smem>>
    %c42 = arith.constant 42 : index
    %42 = memref.load %arg1[%c42] : memref<78xf32, #tpu.memory_space<smem>>
    %c43 = arith.constant 43 : index
    %43 = memref.load %arg1[%c43] : memref<78xf32, #tpu.memory_space<smem>>
    %c44 = arith.constant 44 : index
    %44 = memref.load %arg1[%c44] : memref<78xf32, #tpu.memory_space<smem>>
    %c45 = arith.constant 45 : index
    %45 = memref.load %arg1[%c45] : memref<78xf32, #tpu.memory_space<smem>>
    %c46 = arith.constant 46 : index
    %46 = memref.load %arg1[%c46] : memref<78xf32, #tpu.memory_space<smem>>
    %c47 = arith.constant 47 : index
    %47 = memref.load %arg1[%c47] : memref<78xf32, #tpu.memory_space<smem>>
    %c48 = arith.constant 48 : index
    %48 = memref.load %arg1[%c48] : memref<78xf32, #tpu.memory_space<smem>>
    %c49 = arith.constant 49 : index
    %49 = memref.load %arg1[%c49] : memref<78xf32, #tpu.memory_space<smem>>
    %c50 = arith.constant 50 : index
    %50 = memref.load %arg1[%c50] : memref<78xf32, #tpu.memory_space<smem>>
    %c51 = arith.constant 51 : index
    %51 = memref.load %arg1[%c51] : memref<78xf32, #tpu.memory_space<smem>>
    %c52 = arith.constant 52 : index
    %52 = memref.load %arg1[%c52] : memref<78xf32, #tpu.memory_space<smem>>
    %c53 = arith.constant 53 : index
    %53 = memref.load %arg1[%c53] : memref<78xf32, #tpu.memory_space<smem>>
    %c54 = arith.constant 54 : index
    %54 = memref.load %arg1[%c54] : memref<78xf32, #tpu.memory_space<smem>>
    %c55 = arith.constant 55 : index
    %55 = memref.load %arg1[%c55] : memref<78xf32, #tpu.memory_space<smem>>
    %c56 = arith.constant 56 : index
    %56 = memref.load %arg1[%c56] : memref<78xf32, #tpu.memory_space<smem>>
    %c57 = arith.constant 57 : index
    %57 = memref.load %arg1[%c57] : memref<78xf32, #tpu.memory_space<smem>>
    %c58 = arith.constant 58 : index
    %58 = memref.load %arg1[%c58] : memref<78xf32, #tpu.memory_space<smem>>
    %c59 = arith.constant 59 : index
    %59 = memref.load %arg1[%c59] : memref<78xf32, #tpu.memory_space<smem>>
    %c60 = arith.constant 60 : index
    %60 = memref.load %arg1[%c60] : memref<78xf32, #tpu.memory_space<smem>>
    %c61 = arith.constant 61 : index
    %61 = memref.load %arg1[%c61] : memref<78xf32, #tpu.memory_space<smem>>
    %c62 = arith.constant 62 : index
    %62 = memref.load %arg1[%c62] : memref<78xf32, #tpu.memory_space<smem>>
    %c63 = arith.constant 63 : index
    %63 = memref.load %arg1[%c63] : memref<78xf32, #tpu.memory_space<smem>>
    %c64 = arith.constant 64 : index
    %64 = memref.load %arg1[%c64] : memref<78xf32, #tpu.memory_space<smem>>
    %c65 = arith.constant 65 : index
    %65 = memref.load %arg1[%c65] : memref<78xf32, #tpu.memory_space<smem>>
    %c66 = arith.constant 66 : index
    %66 = memref.load %arg1[%c66] : memref<78xf32, #tpu.memory_space<smem>>
    %c67 = arith.constant 67 : index
    %67 = memref.load %arg1[%c67] : memref<78xf32, #tpu.memory_space<smem>>
    %c68 = arith.constant 68 : index
    %68 = memref.load %arg1[%c68] : memref<78xf32, #tpu.memory_space<smem>>
    %c69 = arith.constant 69 : index
    %69 = memref.load %arg1[%c69] : memref<78xf32, #tpu.memory_space<smem>>
    %c70 = arith.constant 70 : index
    %70 = memref.load %arg1[%c70] : memref<78xf32, #tpu.memory_space<smem>>
    %c71 = arith.constant 71 : index
    %71 = memref.load %arg1[%c71] : memref<78xf32, #tpu.memory_space<smem>>
    %c72 = arith.constant 72 : index
    %72 = memref.load %arg1[%c72] : memref<78xf32, #tpu.memory_space<smem>>
    %c73 = arith.constant 73 : index
    %73 = memref.load %arg1[%c73] : memref<78xf32, #tpu.memory_space<smem>>
    %c74 = arith.constant 74 : index
    %74 = memref.load %arg1[%c74] : memref<78xf32, #tpu.memory_space<smem>>
    %c75 = arith.constant 75 : index
    %75 = memref.load %arg1[%c75] : memref<78xf32, #tpu.memory_space<smem>>
    %c76 = arith.constant 76 : index
    %76 = memref.load %arg1[%c76] : memref<78xf32, #tpu.memory_space<smem>>
    %c77 = arith.constant 77 : index
    %77 = memref.load %arg1[%c77] : memref<78xf32, #tpu.memory_space<smem>>
    %c0_0 = arith.constant 0 : index
    %c0_1 = arith.constant 0 : index
    %78 = vector.load %arg2[%c0_0, %c0_1] : memref<8x128xf32, #tpu.memory_space<vmem>>, vector<8x128xf32>
    %79 = vector.broadcast %0 : f32 to vector<8x128xf32>
    %80 = arith.mulf %78, %79 : vector<8x128xf32>
    %81 = vector.broadcast %25 : f32 to vector<8x128xf32>
    %82 = arith.addf %80, %81 : vector<8x128xf32>
    %83 = math.tanh %82 : vector<8x128xf32>
    %84 = vector.broadcast %50 : f32 to vector<8x128xf32>
    %85 = arith.mulf %84, %83 : vector<8x128xf32>
    %86 = vector.broadcast %1 : f32 to vector<8x128xf32>
    %87 = arith.mulf %78, %86 : vector<8x128xf32>
    %88 = vector.broadcast %26 : f32 to vector<8x128xf32>
    %89 = arith.addf %87, %88 : vector<8x128xf32>
    %90 = math.tanh %89 : vector<8x128xf32>
    %91 = vector.broadcast %51 : f32 to vector<8x128xf32>
    %92 = arith.mulf %91, %90 : vector<8x128xf32>
    %93 = arith.addf %85, %92 : vector<8x128xf32>
    %94 = vector.broadcast %2 : f32 to vector<8x128xf32>
    %95 = arith.mulf %78, %94 : vector<8x128xf32>
    %96 = vector.broadcast %27 : f32 to vector<8x128xf32>
    %97 = arith.addf %95, %96 : vector<8x128xf32>
    %98 = math.tanh %97 : vector<8x128xf32>
    %99 = vector.broadcast %52 : f32 to vector<8x128xf32>
    %100 = arith.mulf %99, %98 : vector<8x128xf32>
    %101 = arith.addf %93, %100 : vector<8x128xf32>
    %102 = vector.broadcast %3 : f32 to vector<8x128xf32>
    %103 = arith.mulf %78, %102 : vector<8x128xf32>
    %104 = vector.broadcast %28 : f32 to vector<8x128xf32>
    %105 = arith.addf %103, %104 : vector<8x128xf32>
    %106 = math.tanh %105 : vector<8x128xf32>
    %107 = vector.broadcast %53 : f32 to vector<8x128xf32>
    %108 = arith.mulf %107, %106 : vector<8x128xf32>
    %109 = arith.addf %101, %108 : vector<8x128xf32>
    %110 = vector.broadcast %4 : f32 to vector<8x128xf32>
    %111 = arith.mulf %78, %110 : vector<8x128xf32>
    %112 = vector.broadcast %29 : f32 to vector<8x128xf32>
    %113 = arith.addf %111, %112 : vector<8x128xf32>
    %114 = math.tanh %113 : vector<8x128xf32>
    %115 = vector.broadcast %54 : f32 to vector<8x128xf32>
    %116 = arith.mulf %115, %114 : vector<8x128xf32>
    %117 = arith.addf %109, %116 : vector<8x128xf32>
    %118 = vector.broadcast %5 : f32 to vector<8x128xf32>
    %119 = arith.mulf %78, %118 : vector<8x128xf32>
    %120 = vector.broadcast %30 : f32 to vector<8x128xf32>
    %121 = arith.addf %119, %120 : vector<8x128xf32>
    %122 = math.tanh %121 : vector<8x128xf32>
    %123 = vector.broadcast %55 : f32 to vector<8x128xf32>
    %124 = arith.mulf %123, %122 : vector<8x128xf32>
    %125 = arith.addf %117, %124 : vector<8x128xf32>
    %126 = vector.broadcast %6 : f32 to vector<8x128xf32>
    %127 = arith.mulf %78, %126 : vector<8x128xf32>
    %128 = vector.broadcast %31 : f32 to vector<8x128xf32>
    %129 = arith.addf %127, %128 : vector<8x128xf32>
    %130 = math.tanh %129 : vector<8x128xf32>
    %131 = vector.broadcast %56 : f32 to vector<8x128xf32>
    %132 = arith.mulf %131, %130 : vector<8x128xf32>
    %133 = arith.addf %125, %132 : vector<8x128xf32>
    %134 = vector.broadcast %7 : f32 to vector<8x128xf32>
    %135 = arith.mulf %78, %134 : vector<8x128xf32>
    %136 = vector.broadcast %32 : f32 to vector<8x128xf32>
    %137 = arith.addf %135, %136 : vector<8x128xf32>
    %138 = math.tanh %137 : vector<8x128xf32>
    %139 = vector.broadcast %57 : f32 to vector<8x128xf32>
    %140 = arith.mulf %139, %138 : vector<8x128xf32>
    %141 = arith.addf %133, %140 : vector<8x128xf32>
    %142 = vector.broadcast %8 : f32 to vector<8x128xf32>
    %143 = arith.mulf %78, %142 : vector<8x128xf32>
    %144 = vector.broadcast %33 : f32 to vector<8x128xf32>
    %145 = arith.addf %143, %144 : vector<8x128xf32>
    %146 = math.tanh %145 : vector<8x128xf32>
    %147 = vector.broadcast %58 : f32 to vector<8x128xf32>
    %148 = arith.mulf %147, %146 : vector<8x128xf32>
    %149 = arith.addf %141, %148 : vector<8x128xf32>
    %150 = vector.broadcast %9 : f32 to vector<8x128xf32>
    %151 = arith.mulf %78, %150 : vector<8x128xf32>
    %152 = vector.broadcast %34 : f32 to vector<8x128xf32>
    %153 = arith.addf %151, %152 : vector<8x128xf32>
    %154 = math.tanh %153 : vector<8x128xf32>
    %155 = vector.broadcast %59 : f32 to vector<8x128xf32>
    %156 = arith.mulf %155, %154 : vector<8x128xf32>
    %157 = arith.addf %149, %156 : vector<8x128xf32>
    %158 = vector.broadcast %10 : f32 to vector<8x128xf32>
    %159 = arith.mulf %78, %158 : vector<8x128xf32>
    %160 = vector.broadcast %35 : f32 to vector<8x128xf32>
    %161 = arith.addf %159, %160 : vector<8x128xf32>
    %162 = math.tanh %161 : vector<8x128xf32>
    %163 = vector.broadcast %60 : f32 to vector<8x128xf32>
    %164 = arith.mulf %163, %162 : vector<8x128xf32>
    %165 = arith.addf %157, %164 : vector<8x128xf32>
    %166 = vector.broadcast %11 : f32 to vector<8x128xf32>
    %167 = arith.mulf %78, %166 : vector<8x128xf32>
    %168 = vector.broadcast %36 : f32 to vector<8x128xf32>
    %169 = arith.addf %167, %168 : vector<8x128xf32>
    %170 = math.tanh %169 : vector<8x128xf32>
    %171 = vector.broadcast %61 : f32 to vector<8x128xf32>
    %172 = arith.mulf %171, %170 : vector<8x128xf32>
    %173 = arith.addf %165, %172 : vector<8x128xf32>
    %174 = vector.broadcast %12 : f32 to vector<8x128xf32>
    %175 = arith.mulf %78, %174 : vector<8x128xf32>
    %176 = vector.broadcast %37 : f32 to vector<8x128xf32>
    %177 = arith.addf %175, %176 : vector<8x128xf32>
    %178 = math.tanh %177 : vector<8x128xf32>
    %179 = vector.broadcast %62 : f32 to vector<8x128xf32>
    %180 = arith.mulf %179, %178 : vector<8x128xf32>
    %181 = arith.addf %173, %180 : vector<8x128xf32>
    %182 = vector.broadcast %13 : f32 to vector<8x128xf32>
    %183 = arith.mulf %78, %182 : vector<8x128xf32>
    %184 = vector.broadcast %38 : f32 to vector<8x128xf32>
    %185 = arith.addf %183, %184 : vector<8x128xf32>
    %186 = math.tanh %185 : vector<8x128xf32>
    %187 = vector.broadcast %63 : f32 to vector<8x128xf32>
    %188 = arith.mulf %187, %186 : vector<8x128xf32>
    %189 = arith.addf %181, %188 : vector<8x128xf32>
    %190 = vector.broadcast %14 : f32 to vector<8x128xf32>
    %191 = arith.mulf %78, %190 : vector<8x128xf32>
    %192 = vector.broadcast %39 : f32 to vector<8x128xf32>
    %193 = arith.addf %191, %192 : vector<8x128xf32>
    %194 = math.tanh %193 : vector<8x128xf32>
    %195 = vector.broadcast %64 : f32 to vector<8x128xf32>
    %196 = arith.mulf %195, %194 : vector<8x128xf32>
    %197 = arith.addf %189, %196 : vector<8x128xf32>
    %198 = vector.broadcast %15 : f32 to vector<8x128xf32>
    %199 = arith.mulf %78, %198 : vector<8x128xf32>
    %200 = vector.broadcast %40 : f32 to vector<8x128xf32>
    %201 = arith.addf %199, %200 : vector<8x128xf32>
    %202 = math.tanh %201 : vector<8x128xf32>
    %203 = vector.broadcast %65 : f32 to vector<8x128xf32>
    %204 = arith.mulf %203, %202 : vector<8x128xf32>
    %205 = arith.addf %197, %204 : vector<8x128xf32>
    %206 = vector.broadcast %16 : f32 to vector<8x128xf32>
    %207 = arith.mulf %78, %206 : vector<8x128xf32>
    %208 = vector.broadcast %41 : f32 to vector<8x128xf32>
    %209 = arith.addf %207, %208 : vector<8x128xf32>
    %210 = math.tanh %209 : vector<8x128xf32>
    %211 = vector.broadcast %66 : f32 to vector<8x128xf32>
    %212 = arith.mulf %211, %210 : vector<8x128xf32>
    %213 = arith.addf %205, %212 : vector<8x128xf32>
    %214 = vector.broadcast %17 : f32 to vector<8x128xf32>
    %215 = arith.mulf %78, %214 : vector<8x128xf32>
    %216 = vector.broadcast %42 : f32 to vector<8x128xf32>
    %217 = arith.addf %215, %216 : vector<8x128xf32>
    %218 = math.tanh %217 : vector<8x128xf32>
    %219 = vector.broadcast %67 : f32 to vector<8x128xf32>
    %220 = arith.mulf %219, %218 : vector<8x128xf32>
    %221 = arith.addf %213, %220 : vector<8x128xf32>
    %222 = vector.broadcast %18 : f32 to vector<8x128xf32>
    %223 = arith.mulf %78, %222 : vector<8x128xf32>
    %224 = vector.broadcast %43 : f32 to vector<8x128xf32>
    %225 = arith.addf %223, %224 : vector<8x128xf32>
    %226 = math.tanh %225 : vector<8x128xf32>
    %227 = vector.broadcast %68 : f32 to vector<8x128xf32>
    %228 = arith.mulf %227, %226 : vector<8x128xf32>
    %229 = arith.addf %221, %228 : vector<8x128xf32>
    %230 = vector.broadcast %19 : f32 to vector<8x128xf32>
    %231 = arith.mulf %78, %230 : vector<8x128xf32>
    %232 = vector.broadcast %44 : f32 to vector<8x128xf32>
    %233 = arith.addf %231, %232 : vector<8x128xf32>
    %234 = math.tanh %233 : vector<8x128xf32>
    %235 = vector.broadcast %69 : f32 to vector<8x128xf32>
    %236 = arith.mulf %235, %234 : vector<8x128xf32>
    %237 = arith.addf %229, %236 : vector<8x128xf32>
    %238 = vector.broadcast %20 : f32 to vector<8x128xf32>
    %239 = arith.mulf %78, %238 : vector<8x128xf32>
    %240 = vector.broadcast %45 : f32 to vector<8x128xf32>
    %241 = arith.addf %239, %240 : vector<8x128xf32>
    %242 = math.tanh %241 : vector<8x128xf32>
    %243 = vector.broadcast %70 : f32 to vector<8x128xf32>
    %244 = arith.mulf %243, %242 : vector<8x128xf32>
    %245 = arith.addf %237, %244 : vector<8x128xf32>
    %246 = vector.broadcast %21 : f32 to vector<8x128xf32>
    %247 = arith.mulf %78, %246 : vector<8x128xf32>
    %248 = vector.broadcast %46 : f32 to vector<8x128xf32>
    %249 = arith.addf %247, %248 : vector<8x128xf32>
    %250 = math.tanh %249 : vector<8x128xf32>
    %251 = vector.broadcast %71 : f32 to vector<8x128xf32>
    %252 = arith.mulf %251, %250 : vector<8x128xf32>
    %253 = arith.addf %245, %252 : vector<8x128xf32>
    %254 = vector.broadcast %22 : f32 to vector<8x128xf32>
    %255 = arith.mulf %78, %254 : vector<8x128xf32>
    %256 = vector.broadcast %47 : f32 to vector<8x128xf32>
    %257 = arith.addf %255, %256 : vector<8x128xf32>
    %258 = math.tanh %257 : vector<8x128xf32>
    %259 = vector.broadcast %72 : f32 to vector<8x128xf32>
    %260 = arith.mulf %259, %258 : vector<8x128xf32>
    %261 = arith.addf %253, %260 : vector<8x128xf32>
    %262 = vector.broadcast %23 : f32 to vector<8x128xf32>
    %263 = arith.mulf %78, %262 : vector<8x128xf32>
    %264 = vector.broadcast %48 : f32 to vector<8x128xf32>
    %265 = arith.addf %263, %264 : vector<8x128xf32>
    %266 = math.tanh %265 : vector<8x128xf32>
    %267 = vector.broadcast %73 : f32 to vector<8x128xf32>
    %268 = arith.mulf %267, %266 : vector<8x128xf32>
    %269 = arith.addf %261, %268 : vector<8x128xf32>
    %270 = vector.broadcast %24 : f32 to vector<8x128xf32>
    %271 = arith.mulf %78, %270 : vector<8x128xf32>
    %272 = vector.broadcast %49 : f32 to vector<8x128xf32>
    %273 = arith.addf %271, %272 : vector<8x128xf32>
    %274 = math.tanh %273 : vector<8x128xf32>
    %275 = vector.broadcast %74 : f32 to vector<8x128xf32>
    %276 = arith.mulf %275, %274 : vector<8x128xf32>
    %277 = arith.addf %269, %276 : vector<8x128xf32>
    %c0_2 = arith.constant 0 : index
    %c0_3 = arith.constant 0 : index
    %278 = vector.load %arg3[%c0_2, %c0_3] : memref<8x128xf32, #tpu.memory_space<vmem>>, vector<8x128xf32>
    %279 = vector.broadcast %0 : f32 to vector<8x128xf32>
    %280 = arith.mulf %278, %279 : vector<8x128xf32>
    %281 = vector.broadcast %25 : f32 to vector<8x128xf32>
    %282 = arith.addf %280, %281 : vector<8x128xf32>
    %283 = math.tanh %282 : vector<8x128xf32>
    %284 = vector.broadcast %50 : f32 to vector<8x128xf32>
    %285 = arith.mulf %284, %283 : vector<8x128xf32>
    %286 = vector.broadcast %1 : f32 to vector<8x128xf32>
    %287 = arith.mulf %278, %286 : vector<8x128xf32>
    %288 = vector.broadcast %26 : f32 to vector<8x128xf32>
    %289 = arith.addf %287, %288 : vector<8x128xf32>
    %290 = math.tanh %289 : vector<8x128xf32>
    %291 = vector.broadcast %51 : f32 to vector<8x128xf32>
    %292 = arith.mulf %291, %290 : vector<8x128xf32>
    %293 = arith.addf %285, %292 : vector<8x128xf32>
    %294 = vector.broadcast %2 : f32 to vector<8x128xf32>
    %295 = arith.mulf %278, %294 : vector<8x128xf32>
    %296 = vector.broadcast %27 : f32 to vector<8x128xf32>
    %297 = arith.addf %295, %296 : vector<8x128xf32>
    %298 = math.tanh %297 : vector<8x128xf32>
    %299 = vector.broadcast %52 : f32 to vector<8x128xf32>
    %300 = arith.mulf %299, %298 : vector<8x128xf32>
    %301 = arith.addf %293, %300 : vector<8x128xf32>
    %302 = vector.broadcast %3 : f32 to vector<8x128xf32>
    %303 = arith.mulf %278, %302 : vector<8x128xf32>
    %304 = vector.broadcast %28 : f32 to vector<8x128xf32>
    %305 = arith.addf %303, %304 : vector<8x128xf32>
    %306 = math.tanh %305 : vector<8x128xf32>
    %307 = vector.broadcast %53 : f32 to vector<8x128xf32>
    %308 = arith.mulf %307, %306 : vector<8x128xf32>
    %309 = arith.addf %301, %308 : vector<8x128xf32>
    %310 = vector.broadcast %4 : f32 to vector<8x128xf32>
    %311 = arith.mulf %278, %310 : vector<8x128xf32>
    %312 = vector.broadcast %29 : f32 to vector<8x128xf32>
    %313 = arith.addf %311, %312 : vector<8x128xf32>
    %314 = math.tanh %313 : vector<8x128xf32>
    %315 = vector.broadcast %54 : f32 to vector<8x128xf32>
    %316 = arith.mulf %315, %314 : vector<8x128xf32>
    %317 = arith.addf %309, %316 : vector<8x128xf32>
    %318 = vector.broadcast %5 : f32 to vector<8x128xf32>
    %319 = arith.mulf %278, %318 : vector<8x128xf32>
    %320 = vector.broadcast %30 : f32 to vector<8x128xf32>
    %321 = arith.addf %319, %320 : vector<8x128xf32>
    %322 = math.tanh %321 : vector<8x128xf32>
    %323 = vector.broadcast %55 : f32 to vector<8x128xf32>
    %324 = arith.mulf %323, %322 : vector<8x128xf32>
    %325 = arith.addf %317, %324 : vector<8x128xf32>
    %326 = vector.broadcast %6 : f32 to vector<8x128xf32>
    %327 = arith.mulf %278, %326 : vector<8x128xf32>
    %328 = vector.broadcast %31 : f32 to vector<8x128xf32>
    %329 = arith.addf %327, %328 : vector<8x128xf32>
    %330 = math.tanh %329 : vector<8x128xf32>
    %331 = vector.broadcast %56 : f32 to vector<8x128xf32>
    %332 = arith.mulf %331, %330 : vector<8x128xf32>
    %333 = arith.addf %325, %332 : vector<8x128xf32>
    %334 = vector.broadcast %7 : f32 to vector<8x128xf32>
    %335 = arith.mulf %278, %334 : vector<8x128xf32>
    %336 = vector.broadcast %32 : f32 to vector<8x128xf32>
    %337 = arith.addf %335, %336 : vector<8x128xf32>
    %338 = math.tanh %337 : vector<8x128xf32>
    %339 = vector.broadcast %57 : f32 to vector<8x128xf32>
    %340 = arith.mulf %339, %338 : vector<8x128xf32>
    %341 = arith.addf %333, %340 : vector<8x128xf32>
    %342 = vector.broadcast %8 : f32 to vector<8x128xf32>
    %343 = arith.mulf %278, %342 : vector<8x128xf32>
    %344 = vector.broadcast %33 : f32 to vector<8x128xf32>
    %345 = arith.addf %343, %344 : vector<8x128xf32>
    %346 = math.tanh %345 : vector<8x128xf32>
    %347 = vector.broadcast %58 : f32 to vector<8x128xf32>
    %348 = arith.mulf %347, %346 : vector<8x128xf32>
    %349 = arith.addf %341, %348 : vector<8x128xf32>
    %350 = vector.broadcast %9 : f32 to vector<8x128xf32>
    %351 = arith.mulf %278, %350 : vector<8x128xf32>
    %352 = vector.broadcast %34 : f32 to vector<8x128xf32>
    %353 = arith.addf %351, %352 : vector<8x128xf32>
    %354 = math.tanh %353 : vector<8x128xf32>
    %355 = vector.broadcast %59 : f32 to vector<8x128xf32>
    %356 = arith.mulf %355, %354 : vector<8x128xf32>
    %357 = arith.addf %349, %356 : vector<8x128xf32>
    %358 = vector.broadcast %10 : f32 to vector<8x128xf32>
    %359 = arith.mulf %278, %358 : vector<8x128xf32>
    %360 = vector.broadcast %35 : f32 to vector<8x128xf32>
    %361 = arith.addf %359, %360 : vector<8x128xf32>
    %362 = math.tanh %361 : vector<8x128xf32>
    %363 = vector.broadcast %60 : f32 to vector<8x128xf32>
    %364 = arith.mulf %363, %362 : vector<8x128xf32>
    %365 = arith.addf %357, %364 : vector<8x128xf32>
    %366 = vector.broadcast %11 : f32 to vector<8x128xf32>
    %367 = arith.mulf %278, %366 : vector<8x128xf32>
    %368 = vector.broadcast %36 : f32 to vector<8x128xf32>
    %369 = arith.addf %367, %368 : vector<8x128xf32>
    %370 = math.tanh %369 : vector<8x128xf32>
    %371 = vector.broadcast %61 : f32 to vector<8x128xf32>
    %372 = arith.mulf %371, %370 : vector<8x128xf32>
    %373 = arith.addf %365, %372 : vector<8x128xf32>
    %374 = vector.broadcast %12 : f32 to vector<8x128xf32>
    %375 = arith.mulf %278, %374 : vector<8x128xf32>
    %376 = vector.broadcast %37 : f32 to vector<8x128xf32>
    %377 = arith.addf %375, %376 : vector<8x128xf32>
    %378 = math.tanh %377 : vector<8x128xf32>
    %379 = vector.broadcast %62 : f32 to vector<8x128xf32>
    %380 = arith.mulf %379, %378 : vector<8x128xf32>
    %381 = arith.addf %373, %380 : vector<8x128xf32>
    %382 = vector.broadcast %13 : f32 to vector<8x128xf32>
    %383 = arith.mulf %278, %382 : vector<8x128xf32>
    %384 = vector.broadcast %38 : f32 to vector<8x128xf32>
    %385 = arith.addf %383, %384 : vector<8x128xf32>
    %386 = math.tanh %385 : vector<8x128xf32>
    %387 = vector.broadcast %63 : f32 to vector<8x128xf32>
    %388 = arith.mulf %387, %386 : vector<8x128xf32>
    %389 = arith.addf %381, %388 : vector<8x128xf32>
    %390 = vector.broadcast %14 : f32 to vector<8x128xf32>
    %391 = arith.mulf %278, %390 : vector<8x128xf32>
    %392 = vector.broadcast %39 : f32 to vector<8x128xf32>
    %393 = arith.addf %391, %392 : vector<8x128xf32>
    %394 = math.tanh %393 : vector<8x128xf32>
    %395 = vector.broadcast %64 : f32 to vector<8x128xf32>
    %396 = arith.mulf %395, %394 : vector<8x128xf32>
    %397 = arith.addf %389, %396 : vector<8x128xf32>
    %398 = vector.broadcast %15 : f32 to vector<8x128xf32>
    %399 = arith.mulf %278, %398 : vector<8x128xf32>
    %400 = vector.broadcast %40 : f32 to vector<8x128xf32>
    %401 = arith.addf %399, %400 : vector<8x128xf32>
    %402 = math.tanh %401 : vector<8x128xf32>
    %403 = vector.broadcast %65 : f32 to vector<8x128xf32>
    %404 = arith.mulf %403, %402 : vector<8x128xf32>
    %405 = arith.addf %397, %404 : vector<8x128xf32>
    %406 = vector.broadcast %16 : f32 to vector<8x128xf32>
    %407 = arith.mulf %278, %406 : vector<8x128xf32>
    %408 = vector.broadcast %41 : f32 to vector<8x128xf32>
    %409 = arith.addf %407, %408 : vector<8x128xf32>
    %410 = math.tanh %409 : vector<8x128xf32>
    %411 = vector.broadcast %66 : f32 to vector<8x128xf32>
    %412 = arith.mulf %411, %410 : vector<8x128xf32>
    %413 = arith.addf %405, %412 : vector<8x128xf32>
    %414 = vector.broadcast %17 : f32 to vector<8x128xf32>
    %415 = arith.mulf %278, %414 : vector<8x128xf32>
    %416 = vector.broadcast %42 : f32 to vector<8x128xf32>
    %417 = arith.addf %415, %416 : vector<8x128xf32>
    %418 = math.tanh %417 : vector<8x128xf32>
    %419 = vector.broadcast %67 : f32 to vector<8x128xf32>
    %420 = arith.mulf %419, %418 : vector<8x128xf32>
    %421 = arith.addf %413, %420 : vector<8x128xf32>
    %422 = vector.broadcast %18 : f32 to vector<8x128xf32>
    %423 = arith.mulf %278, %422 : vector<8x128xf32>
    %424 = vector.broadcast %43 : f32 to vector<8x128xf32>
    %425 = arith.addf %423, %424 : vector<8x128xf32>
    %426 = math.tanh %425 : vector<8x128xf32>
    %427 = vector.broadcast %68 : f32 to vector<8x128xf32>
    %428 = arith.mulf %427, %426 : vector<8x128xf32>
    %429 = arith.addf %421, %428 : vector<8x128xf32>
    %430 = vector.broadcast %19 : f32 to vector<8x128xf32>
    %431 = arith.mulf %278, %430 : vector<8x128xf32>
    %432 = vector.broadcast %44 : f32 to vector<8x128xf32>
    %433 = arith.addf %431, %432 : vector<8x128xf32>
    %434 = math.tanh %433 : vector<8x128xf32>
    %435 = vector.broadcast %69 : f32 to vector<8x128xf32>
    %436 = arith.mulf %435, %434 : vector<8x128xf32>
    %437 = arith.addf %429, %436 : vector<8x128xf32>
    %438 = vector.broadcast %20 : f32 to vector<8x128xf32>
    %439 = arith.mulf %278, %438 : vector<8x128xf32>
    %440 = vector.broadcast %45 : f32 to vector<8x128xf32>
    %441 = arith.addf %439, %440 : vector<8x128xf32>
    %442 = math.tanh %441 : vector<8x128xf32>
    %443 = vector.broadcast %70 : f32 to vector<8x128xf32>
    %444 = arith.mulf %443, %442 : vector<8x128xf32>
    %445 = arith.addf %437, %444 : vector<8x128xf32>
    %446 = vector.broadcast %21 : f32 to vector<8x128xf32>
    %447 = arith.mulf %278, %446 : vector<8x128xf32>
    %448 = vector.broadcast %46 : f32 to vector<8x128xf32>
    %449 = arith.addf %447, %448 : vector<8x128xf32>
    %450 = math.tanh %449 : vector<8x128xf32>
    %451 = vector.broadcast %71 : f32 to vector<8x128xf32>
    %452 = arith.mulf %451, %450 : vector<8x128xf32>
    %453 = arith.addf %445, %452 : vector<8x128xf32>
    %454 = vector.broadcast %22 : f32 to vector<8x128xf32>
    %455 = arith.mulf %278, %454 : vector<8x128xf32>
    %456 = vector.broadcast %47 : f32 to vector<8x128xf32>
    %457 = arith.addf %455, %456 : vector<8x128xf32>
    %458 = math.tanh %457 : vector<8x128xf32>
    %459 = vector.broadcast %72 : f32 to vector<8x128xf32>
    %460 = arith.mulf %459, %458 : vector<8x128xf32>
    %461 = arith.addf %453, %460 : vector<8x128xf32>
    %462 = vector.broadcast %23 : f32 to vector<8x128xf32>
    %463 = arith.mulf %278, %462 : vector<8x128xf32>
    %464 = vector.broadcast %48 : f32 to vector<8x128xf32>
    %465 = arith.addf %463, %464 : vector<8x128xf32>
    %466 = math.tanh %465 : vector<8x128xf32>
    %467 = vector.broadcast %73 : f32 to vector<8x128xf32>
    %468 = arith.mulf %467, %466 : vector<8x128xf32>
    %469 = arith.addf %461, %468 : vector<8x128xf32>
    %470 = vector.broadcast %24 : f32 to vector<8x128xf32>
    %471 = arith.mulf %278, %470 : vector<8x128xf32>
    %472 = vector.broadcast %49 : f32 to vector<8x128xf32>
    %473 = arith.addf %471, %472 : vector<8x128xf32>
    %474 = math.tanh %473 : vector<8x128xf32>
    %475 = vector.broadcast %74 : f32 to vector<8x128xf32>
    %476 = arith.mulf %475, %474 : vector<8x128xf32>
    %477 = arith.addf %469, %476 : vector<8x128xf32>
    %478 = vector.broadcast %75 : f32 to vector<8x128xf32>
    %479 = arith.mulf %478, %277 : vector<8x128xf32>
    %480 = vector.broadcast %76 : f32 to vector<8x128xf32>
    %481 = arith.mulf %480, %477 : vector<8x128xf32>
    %482 = arith.addf %479, %481 : vector<8x128xf32>
    %483 = vector.broadcast %77 : f32 to vector<8x128xf32>
    %484 = arith.addf %482, %483 : vector<8x128xf32>
    %485 = arith.negf %484 : vector<8x128xf32>
    %486 = math.exp %485 : vector<8x128xf32>
    %cst = arith.constant 1.000000e+00 : f32
    %487 = vector.broadcast %cst : f32 to vector<8x128xf32>
    %488 = arith.addf %487, %486 : vector<8x128xf32>
    %489 = arith.divf %487, %488 : vector<8x128xf32>
    %c0_4 = arith.constant 0 : index
    %c0_5 = arith.constant 0 : index
    %490 = vector.load %arg4[%c0_4, %c0_5] : memref<8x128xf32, #tpu.memory_space<vmem>>, vector<8x128xf32>
    tpu.vector_store %arg4[%c0_4, %c0_5], %489 {strides = array<i32>} : memref<8x128xf32, #tpu.memory_space<vmem>>, vector<8x128xf32>,
    return
  }
  func.func @transform_0(%arg0: i32) -> i32 {
    %c0_i32 = arith.constant 0 : i32
    %c0_i32_0 = arith.constant 0 : i32
    return %c0_i32 : i32
  }
  func.func @transform_1(%arg0: i32) -> (i32, i32) {
    %c0_i32 = arith.constant 0 : i32
    %c0_i32_0 = arith.constant 0 : i32
    return %arg0, %c0_i32 : i32, i32
  }
  func.func @transform_2(%arg0: i32) -> (i32, i32) {
    %c0_i32 = arith.constant 0 : i32
    %c0_i32_0 = arith.constant 0 : i32
    return %arg0, %c0_i32 : i32, i32
  }
  func.func @transform_3(%arg0: i32) -> (i32, i32) {
    %c0_i32 = arith.constant 0 : i32
    %c0_i32_0 = arith.constant 0 : i32
    return %arg0, %c0_i32 : i32, i32
  }
}

</mosaic_0001>

<llo_original>
// kernel: tpu_custom_call.1
$region0: #{tpu_custom_call.1}
  #allocation0 [shape = 'u32[]', space=smem, size = 0x4, offset = 0x4, fixed_abs, tag = 'smem constant byte address 0x4 - core index']
  #allocation1 [shape = 'u32[144,128]{1,0:T(1,128)}', space=vmem, size = 0x12000, scoped, tag = 'internal scratch']
  %s0 = inlined_call_operand.hbm [shape: f32[78], index: 0, kind: input, shape index: {}]
  %s1 = inlined_call_operand.hbm [shape: f32[8,128], index: 1, kind: input, shape index: {}]
  %s2 = inlined_call_operand.hbm [shape: f32[8,128], index: 2, kind: input, shape index: {}]
  %s3 = inlined_call_operand.hbm [shape: f32[8,128], index: 3, kind: output, shape index: {}]
  %s4 = sld [smem:[#allocation0]]
  $region34: #{tpu_custom_call.1} parent=0
    _
  %s6 = ssub.s32 1, %s4
  %s7 = scalar_select 0, %s6, %s4
  $region1: #{tpu_custom_call.1} parent=0
    #allocation2 [shape = 'u8[512]{0}', space=smem, size = 0x200, scoped, tag = 'input window, operand 0, single buffered']
    #allocation3 [shape = 's32[1]{0}', space=sflag, size = 0x4, scoped, tag = 'scoped memory for tpu_custom_call.1']
    #allocation4 [shape = 's32[1]{0}', space=sflag, size = 0x4, scoped, tag = 'scoped memory for tpu_custom_call.1']
    #allocation5 [shape = 's32[1]{0}', space=sflag, size = 0x4, scoped, tag = 'scoped memory for tpu_custom_call.1']
    #allocation6 [shape = 'u8[4096]{0}', space=vmem, size = 0x1000, scoped, tag = 'input window, operand 1, single buffered']
    #allocation7 [shape = 'u8[4096]{0}', space=vmem, size = 0x1000, scoped, tag = 'input window, operand 2, single buffered']
    #allocation8 [shape = 's32[1]{0}', space=sflag, size = 0x4, scoped, tag = 'scoped memory for tpu_custom_call.1']
    #allocation9 [shape = 'u8[4096]{0}', space=vmem, size = 0x1000, scoped, tag = 'output window, operand 0, single buffered']
    %8 = vsyncpa [#allocation5], 0
    %9 = vsyncpa [#allocation3], 0
    %10 = vsyncpa [#allocation8], 0
    %11 = vsyncpa [#allocation4], 0
    // Predicated region
    $region2: #{tpu_custom_call.1} parent=1 // pred_check
      _
    $region3: #{tpu_custom_call.1} parent=1 // pred_check_branch
      %13 = sbr.rel (0) target = $region5
    $region4: #{tpu_custom_call.1} parent=1 // pred_region
      %s15 = ssub.s32 16, 16
      %16 = vsyncadd [#allocation5], %s15
      %19 = dma.hbm_to_smem %s0, 16, [#allocation2], [#allocation5]
    $region5: #{tpu_custom_call.1} parent=1 // pred_fallthru
      _
    // Predicated region
    $region6: #{tpu_custom_call.1} parent=1 // pred_check
      _
    $region7: #{tpu_custom_call.1} parent=1 // pred_check_branch
      %21 = sbr.rel (0) target = $region9
    $region8: #{tpu_custom_call.1} parent=1 // pred_region
      %s23 = ssub.s32 128, 128
      %24 = vsyncadd [#allocation3], %s23
      %s26 = sshll.u32 [#allocation6], 4
      %s27 = int_to_ptr.vmem [resolvable:$true] %s26
      %29 = dma.hbm_to_vmem [thread:$0]  %s1, 128, %s27, [#allocation3]
    $region9: #{tpu_custom_call.1} parent=1 // pred_fallthru
      _
    // Predicated region
    $region10: #{tpu_custom_call.1} parent=1 // pred_check
      _
    $region11: #{tpu_custom_call.1} parent=1 // pred_check_branch
      %31 = sbr.rel (0) target = $region13
    $region12: #{tpu_custom_call.1} parent=1 // pred_region
      %s33 = ssub.s32 128, 128
      %34 = vsyncadd [#allocation8], %s33
      %s36 = sshll.u32 [#allocation7], 4
      %s37 = int_to_ptr.vmem [resolvable:$true] %s36
      %39 = dma.hbm_to_vmem [thread:$0]  %s2, 128, %s37, [#allocation8]
    $region13: #{tpu_custom_call.1} parent=1 // pred_fallthru
      _
    // Predicated region
    $region14: #{tpu_custom_call.1} parent=1 // pred_check
      _
    $region15: #{tpu_custom_call.1} parent=1 // pred_check_branch
      %41 = sbr.rel (0) target = $region17
    $region16: #{tpu_custom_call.1} parent=1 // pred_region
      %42 = dma.done [#allocation5], 16
    $region17: #{tpu_custom_call.1} parent=1 // pred_fallthru
      _
    // Predicated region
    $region18: #{tpu_custom_call.1} parent=1 // pred_check
      _
    $region19: #{tpu_custom_call.1} parent=1 // pred_check_branch
      %44 = sbr.rel (0) target = $region21
    $region20: #{tpu_custom_call.1} parent=1 // pred_region
      %45 = dma.done [#allocation3], 128
    $region21: #{tpu_custom_call.1} parent=1 // pred_fallthru
      _
    // Predicated region
    $region22: #{tpu_custom_call.1} parent=1 // pred_check
      _
    $region23: #{tpu_custom_call.1} parent=1 // pred_check_branch
      %47 = sbr.rel (0) target = $region25
    $region24: #{tpu_custom_call.1} parent=1 // pred_region
      %48 = dma.done [#allocation8], 128
    $region25: #{tpu_custom_call.1} parent=1 // pred_fallthru
      _
    %49 = sfence
    %s50 = sld [smem:[#allocation2]]
    %s51 = sld [smem:[#allocation2 + $0x1]]
    %s52 = sld [smem:[#allocation2 + $0x2]]
    %s53 = sld [smem:[#allocation2 + $0x3]]
    %s54 = sld [smem:[#allocation2 + $0x4]]
    %s55 = sld [smem:[#allocation2 + $0x5]]
    %s56 = sld [smem:[#allocation2 + $0x6]]
    %s57 = sld [smem:[#allocation2 + $0x7]]
    %s58 = sld [smem:[#allocation2 + $0x8]]
    %s59 = sld [smem:[#allocation2 + $0x9]]
    %s60 = sld [smem:[#allocation2 + $0xa]]
    %s61 = sld [smem:[#allocation2 + $0xb]]
    %s62 = sld [smem:[#allocation2 + $0xc]]
    %s63 = sld [smem:[#allocation2 + $0xd]]
    %s64 = sld [smem:[#allocation2 + $0xe]]
    %s65 = sld [smem:[#allocation2 + $0xf]]
    %s66 = sld [smem:[#allocation2 + $0x10]]
    %s67 = sld [smem:[#allocation2 + $0x11]]
    %s68 = sld [smem:[#allocation2 + $0x12]]
    %s69 = sld [smem:[#allocation2 + $0x13]]
    %s70 = sld [smem:[#allocation2 + $0x14]]
    %s71 = sld [smem:[#allocation2 + $0x15]]
    %s72 = sld [smem:[#allocation2 + $0x16]]
    %s73 = sld [smem:[#allocation2 + $0x17]]
    %s74 = sld [smem:[#allocation2 + $0x18]]
    %s75 = sld [smem:[#allocation2 + $0x19]]
    %s76 = sld [smem:[#allocation2 + $0x1a]]
    %s77 = sld [smem:[#allocation2 + $0x1b]]
    %s78 = sld [smem:[#allocation2 + $0x1c]]
    %s79 = sld [smem:[#allocation2 + $0x1d]]
    %s80 = sld [smem:[#allocation2 + $0x1e]]
    %s81 = sld [smem:[#allocation2 + $0x1f]]
    %s82 = sld [smem:[#allocation2 + $0x20]]
    %s83 = sld [smem:[#allocation2 + $0x21]]
    %s84 = sld [smem:[#allocation2 + $0x22]]
    %s85 = sld [smem:[#allocation2 + $0x23]]
    %s86 = sld [smem:[#allocation2 + $0x24]]
    %s87 = sld [smem:[#allocation2 + $0x25]]
    %s88 = sld [smem:[#allocation2 + $0x26]]
    %s89 = sld [smem:[#allocation2 + $0x27]]
    %s90 = sld [smem:[#allocation2 + $0x28]]
    %s91 = sld [smem:[#allocation2 + $0x29]]
    %s92 = sld [smem:[#allocation2 + $0x2a]]
    %s93 = sld [smem:[#allocation2 + $0x2b]]
    %s94 = sld [smem:[#allocation2 + $0x2c]]
    %s95 = sld [smem:[#allocation2 + $0x2d]]
    %s96 = sld [smem:[#allocation2 + $0x2e]]
    %s97 = sld [smem:[#allocation2 + $0x2f]]
    %s98 = sld [smem:[#allocation2 + $0x30]]
    %s99 = sld [smem:[#allocation2 + $0x31]]
    %s100 = sld [smem:[#allocation2 + $0x32]]
    %s101 = sld [smem:[#allocation2 + $0x33]]
    %s102 = sld [smem:[#allocation2 + $0x34]]
    %s103 = sld [smem:[#allocation2 + $0x35]]
    %s104 = sld [smem:[#allocation2 + $0x36]]
    %s105 = sld [smem:[#allocation2 + $0x37]]
    %s106 = sld [smem:[#allocation2 + $0x38]]
    %s107 = sld [smem:[#allocation2 + $0x39]]
    %s108 = sld [smem:[#allocation2 + $0x3a]]
    %s109 = sld [smem:[#allocation2 + $0x3b]]
    %s110 = sld [smem:[#allocation2 + $0x3c]]
    %s111 = sld [smem:[#allocation2 + $0x3d]]
    %s112 = sld [smem:[#allocation2 + $0x3e]]
    %s113 = sld [smem:[#allocation2 + $0x3f]]
    %s114 = sld [smem:[#allocation2 + $0x40]]
    %s115 = sld [smem:[#allocation2 + $0x41]]
    %s116 = sld [smem:[#allocation2 + $0x42]]
    %s117 = sld [smem:[#allocation2 + $0x43]]
    %s118 = sld [smem:[#allocation2 + $0x44]]
    %s119 = sld [smem:[#allocation2 + $0x45]]
    %s120 = sld [smem:[#allocation2 + $0x46]]
    %s121 = sld [smem:[#allocation2 + $0x47]]
    %s122 = sld [smem:[#allocation2 + $0x48]]
    %s123 = sld [smem:[#allocation2 + $0x49]]
    %s124 = sld [smem:[#allocation2 + $0x4a]]
    %s125 = sld [smem:[#allocation2 + $0x4b]]
    %s126 = sld [smem:[#allocation2 + $0x4c]]
    %s127 = sld [smem:[#allocation2 + $0x4d]]
    %v128 = vld [vmem:[#allocation6] sm:$0xff]
    %v129 = vstv %s50
    %v130 = vmul.f32 %v128, %v129
    %v131 = vstv %s75
    %v132 = vadd.f32 %v130, %v131
    %v133 = vtanh.pop %v132
    %v134 = vstv %s100
    %v135 = vmul.f32 %v134, %v133
    %v136 = vstv %s51
    %v137 = vmul.f32 %v128, %v136
    %v138 = vstv %s76
    %v139 = vadd.f32 %v137, %v138
    %v140 = vtanh.pop %v139
    %v141 = vstv %s101
    %v142 = vmul.f32 %v141, %v140
    %v143 = vadd.f32 %v135, %v142
    %v144 = vstv %s52
    %v145 = vmul.f32 %v128, %v144
    %v146 = vstv %s77
    %v147 = vadd.f32 %v145, %v146
    %v148 = vtanh.pop %v147
    %v149 = vstv %s102
    %v150 = vmul.f32 %v149, %v148
    %v151 = vadd.f32 %v143, %v150
    %v152 = vstv %s53
    %v153 = vmul.f32 %v128, %v152
    %v154 = vstv %s78
    %v155 = vadd.f32 %v153, %v154
    %v156 = vtanh.pop %v155
    %v157 = vstv %s103
    %v158 = vmul.f32 %v157, %v156
    %v159 = vadd.f32 %v151, %v158
    %v160 = vstv %s54
    %v161 = vmul.f32 %v128, %v160
    %v162 = vstv %s79
    %v163 = vadd.f32 %v161, %v162
    %v164 = vtanh.pop %v163
    %v165 = vstv %s104
    %v166 = vmul.f32 %v165, %v164
    %v167 = vadd.f32 %v159, %v166
    %v168 = vstv %s55
    %v169 = vmul.f32 %v128, %v168
    %v170 = vstv %s80
    %v171 = vadd.f32 %v169, %v170
    %v172 = vtanh.pop %v171
    %v173 = vstv %s105
    %v174 = vmul.f32 %v173, %v172
    %v175 = vadd.f32 %v167, %v174
    %v176 = vstv %s56
    %v177 = vmul.f32 %v128, %v176
    %v178 = vstv %s81
    %v179 = vadd.f32 %v177, %v178
    %v180 = vtanh.pop %v179
    %v181 = vstv %s106
    %v182 = vmul.f32 %v181, %v180
    %v183 = vadd.f32 %v175, %v182
    %v184 = vstv %s57
    %v185 = vmul.f32 %v128, %v184
    %v186 = vstv %s82
    %v187 = vadd.f32 %v185, %v186
    %v188 = vtanh.pop %v187
    %v189 = vstv %s107
    %v190 = vmul.f32 %v189, %v188
    %v191 = vadd.f32 %v183, %v190
    %v192 = vstv %s58
    %v193 = vmul.f32 %v128, %v192
    %v194 = vstv %s83
    %v195 = vadd.f32 %v193, %v194
    %v196 = vtanh.pop %v195
    %v197 = vstv %s108
    %v198 = vmul.f32 %v197, %v196
    %v199 = vadd.f32 %v191, %v198
    %v200 = vstv %s59
    %v201 = vmul.f32 %v128, %v200
    %v202 = vstv %s84
    %v203 = vadd.f32 %v201, %v202
    %v204 = vtanh.pop %v203
    %v205 = vstv %s109
    %v206 = vmul.f32 %v205, %v204
    %v207 = vadd.f32 %v199, %v206
    %v208 = vstv %s60
    %v209 = vmul.f32 %v128, %v208
    %v210 = vstv %s85
    %v211 = vadd.f32 %v209, %v210
    %v212 = vtanh.pop %v211
    %v213 = vstv %s110
    %v214 = vmul.f32 %v213, %v212
    %v215 = vadd.f32 %v207, %v214
    %v216 = vstv %s61
    %v217 = vmul.f32 %v128, %v216
    %v218 = vstv %s86
    %v219 = vadd.f32 %v217, %v218
    %v220 = vtanh.pop %v219
    %v221 = vstv %s111
    %v222 = vmul.f32 %v221, %v220
    %v223 = vadd.f32 %v215, %v222
    %v224 = vstv %s62
    %v225 = vmul.f32 %v128, %v224
    %v226 = vstv %s87
    %v227 = vadd.f32 %v225, %v226
    %v228 = vtanh.pop %v227
    %v229 = vstv %s112
    %v230 = vmul.f32 %v229, %v228
    %v231 = vadd.f32 %v223, %v230
    %v232 = vstv %s63
    %v233 = vmul.f32 %v128, %v232
    %v234 = vstv %s88
    %v235 = vadd.f32 %v233, %v234
    %v236 = vtanh.pop %v235
    %v237 = vstv %s113
    %v238 = vmul.f32 %v237, %v236
    %v239 = vadd.f32 %v231, %v238
    %v240 = vstv %s64
    %v241 = vmul.f32 %v128, %v240
    %v242 = vstv %s89
    %v243 = vadd.f32 %v241, %v242
    %v244 = vtanh.pop %v243
    %v245 = vstv %s114
    %v246 = vmul.f32 %v245, %v244
    %v247 = vadd.f32 %v239, %v246
    %v248 = vstv %s65
    %v249 = vmul.f32 %v128, %v248
    %v250 = vstv %s90
    %v251 = vadd.f32 %v249, %v250
    %v252 = vtanh.pop %v251
    %v253 = vstv %s115
    %v254 = vmul.f32 %v253, %v252
    %v255 = vadd.f32 %v247, %v254
    %v256 = vstv %s66
    %v257 = vmul.f32 %v128, %v256
    %v258 = vstv %s91
    %v259 = vadd.f32 %v257, %v258
    %v260 = vtanh.pop %v259
    %v261 = vstv %s116
    %v262 = vmul.f32 %v261, %v260
    %v263 = vadd.f32 %v255, %v262
    %v264 = vstv %s67
    %v265 = vmul.f32 %v128, %v264
    %v266 = vstv %s92
    %v267 = vadd.f32 %v265, %v266
    %v268 = vtanh.pop %v267
    %v269 = vstv %s117
    %v270 = vmul.f32 %v269, %v268
    %v271 = vadd.f32 %v263, %v270
    %v272 = vstv %s68
    %v273 = vmul.f32 %v128, %v272
    %v274 = vstv %s93
    %v275 = vadd.f32 %v273, %v274
    %v276 = vtanh.pop %v275
    %v277 = vstv %s118
    %v278 = vmul.f32 %v277, %v276
    %v279 = vadd.f32 %v271, %v278
    %v280 = vstv %s69
    %v281 = vmul.f32 %v128, %v280
    %v282 = vstv %s94
    %v283 = vadd.f32 %v281, %v282
    %v284 = vtanh.pop %v283
    %v285 = vstv %s119
    %v286 = vmul.f32 %v285, %v284
    %v287 = vadd.f32 %v279, %v286
    %v288 = vstv %s70
    %v289 = vmul.f32 %v128, %v288
    %v290 = vstv %s95
    %v291 = vadd.f32 %v289, %v290
    %v292 = vtanh.pop %v291
    %v293 = vstv %s120
    %v294 = vmul.f32 %v293, %v292
    %v295 = vadd.f32 %v287, %v294
    %v296 = vstv %s71
    %v297 = vmul.f32 %v128, %v296
    %v298 = vstv %s96
    %v299 = vadd.f32 %v297, %v298
    %v300 = vtanh.pop %v299
    %v301 = vstv %s121
    %v302 = vmul.f32 %v301, %v300
    %v303 = vadd.f32 %v295, %v302
    %v304 = vstv %s72
    %v305 = vmul.f32 %v128, %v304
    %v306 = vstv %s97
    %v307 = vadd.f32 %v305, %v306
    %v308 = vtanh.pop %v307
    %v309 = vstv %s122
    %v310 = vmul.f32 %v309, %v308
    %v311 = vadd.f32 %v303, %v310
    %v312 = vstv %s73
    %v313 = vmul.f32 %v128, %v312
    %v314 = vstv %s98
    %v315 = vadd.f32 %v313, %v314
    %v316 = vtanh.pop %v315
    %v317 = vstv %s123
    %v318 = vmul.f32 %v317, %v316
    %v319 = vadd.f32 %v311, %v318
    %v320 = vstv %s74
    %v321 = vmul.f32 %v128, %v320
    %v322 = vstv %s99
    %v323 = vadd.f32 %v321, %v322
    %v324 = vtanh.pop %v323
    %v325 = vstv %s124
    %v326 = vmul.f32 %v325, %v324
    %v327 = vadd.f32 %v319, %v326
    %v328 = vld [vmem:[#allocation7] sm:$0xff]
    %v329 = vmul.f32 %v328, %v129
    %v330 = vadd.f32 %v329, %v131
    %v331 = vtanh.pop %v330
    %v332 = vmul.f32 %v134, %v331
    %v333 = vmul.f32 %v328, %v136
    %v334 = vadd.f32 %v333, %v138
    %v335 = vtanh.pop %v334
    %v336 = vmul.f32 %v141, %v335
    %v337 = vadd.f32 %v332, %v336
    %v338 = vmul.f32 %v328, %v144
    %v339 = vadd.f32 %v338, %v146
    %v340 = vtanh.pop %v339
    %v341 = vmul.f32 %v149, %v340
    %v342 = vadd.f32 %v337, %v341
    %v343 = vmul.f32 %v328, %v152
    %v344 = vadd.f32 %v343, %v154
    %v345 = vtanh.pop %v344
    %v346 = vmul.f32 %v157, %v345
    %v347 = vadd.f32 %v342, %v346
    %v348 = vmul.f32 %v328, %v160
    %v349 = vadd.f32 %v348, %v162
    %v350 = vtanh.pop %v349
    %v351 = vmul.f32 %v165, %v350
    %v352 = vadd.f32 %v347, %v351
    %v353 = vmul.f32 %v328, %v168
    %v354 = vadd.f32 %v353, %v170
    %v355 = vtanh.pop %v354
    %v356 = vmul.f32 %v173, %v355
    %v357 = vadd.f32 %v352, %v356
    %v358 = vmul.f32 %v328, %v176
    %v359 = vadd.f32 %v358, %v178
    %v360 = vtanh.pop %v359
    %v361 = vmul.f32 %v181, %v360
    %v362 = vadd.f32 %v357, %v361
    %v363 = vmul.f32 %v328, %v184
    %v364 = vadd.f32 %v363, %v186
    %v365 = vtanh.pop %v364
    %v366 = vmul.f32 %v189, %v365
    %v367 = vadd.f32 %v362, %v366
    %v368 = vmul.f32 %v328, %v192
    %v369 = vadd.f32 %v368, %v194
    %v370 = vtanh.pop %v369
    %v371 = vmul.f32 %v197, %v370
    %v372 = vadd.f32 %v367, %v371
    %v373 = vmul.f32 %v328, %v200
    %v374 = vadd.f32 %v373, %v202
    %v375 = vtanh.pop %v374
    %v376 = vmul.f32 %v205, %v375
    %v377 = vadd.f32 %v372, %v376
    %v378 = vmul.f32 %v328, %v208
    %v379 = vadd.f32 %v378, %v210
    %v380 = vtanh.pop %v379
    %v381 = vmul.f32 %v213, %v380
    %v382 = vadd.f32 %v377, %v381
    %v383 = vmul.f32 %v328, %v216
    %v384 = vadd.f32 %v383, %v218
    %v385 = vtanh.pop %v384
    %v386 = vmul.f32 %v221, %v385
    %v387 = vadd.f32 %v382, %v386
    %v388 = vmul.f32 %v328, %v224
    %v389 = vadd.f32 %v388, %v226
    %v390 = vtanh.pop %v389
    %v391 = vmul.f32 %v229, %v390
    %v392 = vadd.f32 %v387, %v391
    %v393 = vmul.f32 %v328, %v232
    %v394 = vadd.f32 %v393, %v234
    %v395 = vtanh.pop %v394
    %v396 = vmul.f32 %v237, %v395
    %v397 = vadd.f32 %v392, %v396
    %v398 = vmul.f32 %v328, %v240
    %v399 = vadd.f32 %v398, %v242
    %v400 = vtanh.pop %v399
    %v401 = vmul.f32 %v245, %v400
    %v402 = vadd.f32 %v397, %v401
    %v403 = vmul.f32 %v328, %v248
    %v404 = vadd.f32 %v403, %v250
    %v405 = vtanh.pop %v404
    %v406 = vmul.f32 %v253, %v405
    %v407 = vadd.f32 %v402, %v406
    %v408 = vmul.f32 %v328, %v256
    %v409 = vadd.f32 %v408, %v258
    %v410 = vtanh.pop %v409
    %v411 = vmul.f32 %v261, %v410
    %v412 = vadd.f32 %v407, %v411
    %v413 = vmul.f32 %v328, %v264
    %v414 = vadd.f32 %v413, %v266
    %v415 = vtanh.pop %v414
    %v416 = vmul.f32 %v269, %v415
    %v417 = vadd.f32 %v412, %v416
    %v418 = vmul.f32 %v328, %v272
    %v419 = vadd.f32 %v418, %v274
    %v420 = vtanh.pop %v419
    %v421 = vmul.f32 %v277, %v420
    %v422 = vadd.f32 %v417, %v421
    %v423 = vmul.f32 %v328, %v280
    %v424 = vadd.f32 %v423, %v282
    %v425 = vtanh.pop %v424
    %v426 = vmul.f32 %v285, %v425
    %v427 = vadd.f32 %v422, %v426
    %v428 = vmul.f32 %v328, %v288
    %v429 = vadd.f32 %v428, %v290
    %v430 = vtanh.pop %v429
    %v431 = vmul.f32 %v293, %v430
    %v432 = vadd.f32 %v427, %v431
    %v433 = vmul.f32 %v328, %v296
    %v434 = vadd.f32 %v433, %v298
    %v435 = vtanh.pop %v434
    %v436 = vmul.f32 %v301, %v435
    %v437 = vadd.f32 %v432, %v436
    %v438 = vmul.f32 %v328, %v304
    %v439 = vadd.f32 %v438, %v306
    %v440 = vtanh.pop %v439
    %v441 = vmul.f32 %v309, %v440
    %v442 = vadd.f32 %v437, %v441
    %v443 = vmul.f32 %v328, %v312
    %v444 = vadd.f32 %v443, %v314
    %v445 = vtanh.pop %v444
    %v446 = vmul.f32 %v317, %v445
    %v447 = vadd.f32 %v442, %v446
    %v448 = vmul.f32 %v328, %v320
    %v449 = vadd.f32 %v448, %v322
    %v450 = vtanh.pop %v449
    %v451 = vmul.f32 %v325, %v450
    %v452 = vadd.f32 %v447, %v451
    %v453 = vstv %s125
    %v454 = vmul.f32 %v453, %v327
    %v455 = vstv %s126
    %v456 = vmul.f32 %v455, %v452
    %v457 = vadd.f32 %v454, %v456
    %v458 = vstv %s127
    %v459 = vadd.f32 %v457, %v458
    %v460 = vxor.u32 %v459, 2147483648
    %v461 = vmul.f32 %v460, 1.442695
    %v462 = vpow.pop %v461
    %v463 = vadd.f32 %v462, 1.0
    %v464 = vrcp.pop %v463
    %v465 = vmul.f32 1.0, %v464
    %466 = vst [vmem:[#allocation9] sm:$0xff] %v465
    // Predicated region
    $region26: #{tpu_custom_call.1} parent=1 // pred_check
      _
    $region27: #{tpu_custom_call.1} parent=1 // pred_check_branch
      %468 = sbr.rel (0) target = $region29
    $region28: #{tpu_custom_call.1} parent=1 // pred_region
      %s470 = ssub.s32 128, 128
      %471 = vsyncadd [#allocation4], %s470
      %s473 = sshll.u32 [#allocation9], 4
      %s474 = int_to_ptr.vmem [resolvable:$true] %s473
      %476 = dma.vmem_to_hbm [thread:$0]  %s474, 128, %s3, [#allocation4]
    $region29: #{tpu_custom_call.1} parent=1 // pred_fallthru
      _
    // Predicated region
    $region30: #{tpu_custom_call.1} parent=1 // pred_check
      _
    $region31: #{tpu_custom_call.1} parent=1 // pred_check_branch
      %478 = sbr.rel (0) target = $region33
    $region32: #{tpu_custom_call.1} parent=1 // pred_region
      %479 = dma.done [#allocation4], 128
    $region33: #{tpu_custom_call.1} parent=1 // pred_fallthru
      _
    %480 = vsyncpa [#allocation3], 1
    %481 = vsyncpa [#allocation8], 1
    %482 = vsyncpa [#allocation4], 1
    %483 = vsyncpa [#allocation5], 1

</llo_original>
